<compile_context>
chip_gen: v5e
topology: v5e:2x2
jax: 0.10.0
libtpu: 0.0.40
codegen_flags: <defaults>
</compile_context>

<pallas_src>
import functools

import jax
import jax.numpy as jnp
from jax.experimental import pallas as pl
from jax.experimental.pallas import tpu as pltpu


_LANES = 128          # vreg lane width
_SUBLANES = 8         # vreg sublane count
_TILE_ROWS = 512      # large-input row tile (512*128*4 B = 256 KiB/buffer; 4x << 16 MiB)


# ---------------------------------------------------------------------------
# Pallas kernel: crop-keypoint normalization (elementwise, memory-bound).
#   channel 0: x * (1 / (192 // 2)) - 1
#   channel 1: y * (1 / (256 // 2)) - 1
#   channel>1: passthrough
# Operates on a lane-dense (tile_rows, 128) slab of the flattened keypoint array;
# the per-element channel index is recovered from a lane iota (compile-time
# immediates), so no constant tensors are DMA'd in and no masked stores are emitted.
# ---------------------------------------------------------------------------
def _normalize_crop_kernel(kp_ref, out_ref, *, C: int):
    kp = kp_ref[...]
    lane = jax.lax.broadcasted_iota(jnp.int32, kp.shape, dimension=kp.ndim - 1)
    if _LANES % C == 0:
        # Row offsets are multiples of 128, so flat_index % C depends on the lane only.
        if (C & (C - 1)) == 0:
            ch = lane & (C - 1)          # cheap bitwise-and instead of integer modulo
        else:
            ch = lane % C
    else:
        # General fallback: channel = global flat index % C.
        row = jax.lax.broadcasted_iota(jnp.int32, kp.shape, dimension=kp.ndim - 2)
        row_start = pl.program_id(0) * kp.shape[-2]
        ch = ((row_start + row) * _LANES + lane) % C

    one = jnp.float32(1.0)
    scale = jnp.where(ch == 0, jnp.float32(1.0 / (192 // 2)),
                      jnp.where(ch == 1, jnp.float32(1.0 / (256 // 2)), one))
    shift = jnp.where(ch < 2, one, jnp.float32(0.0))
    out_ref[...] = kp * scale.astype(kp.dtype) - shift.astype(kp.dtype)


def normalize_keypoints_2d_crop(kp_crop: jax.Array) -> jax.Array:
    """Pallas equivalent of:
         kp_crop[..., 0] = kp_crop[..., 0] / (192 // 2) - 1
         kp_crop[..., 1] = kp_crop[..., 1] / (256 // 2) - 1
    (channels >= 2, if present, pass through untouched).

    Layout plumbing (flatten / pad / reshape) happens in the wrapper so the kernel
    sees a fully lane-dense (rows, 128) slab with unmasked full-width stores.
    """
    B, J, C = kp_crop.shape
    total = B * J * C

    rows = pl.cdiv(total, _LANES)
    if rows <= _TILE_ROWS:
        # Small input: a single block, rounded up to a sublane multiple of 8.
        tile_rows = ((rows + _SUBLANES - 1) // _SUBLANES) * _SUBLANES
        rows_padded = tile_rows
    else:
        tile_rows = _TILE_ROWS
        rows_padded = ((rows + _TILE_ROWS - 1) // _TILE_ROWS) * _TILE_ROWS

    pad = rows_padded * _LANES - total
    kp_slab = jnp.pad(kp_crop.reshape(-1), (0, pad)).reshape(rows_padded, _LANES)

    out_slab = pl.pallas_call(
        functools.partial(_normalize_crop_kernel, C=C),
        out_shape=jax.ShapeDtypeStruct(kp_slab.shape, kp_slab.dtype),
        grid=(rows_padded // tile_rows,),
        in_specs=[pl.BlockSpec((tile_rows, _LANES), lambda i: (i, 0))],
        out_specs=pl.BlockSpec((tile_rows, _LANES), lambda i: (i, 0)),
        compiler_params=pltpu.CompilerParams(
            dimension_semantics=("parallel",),   # lets v7x shard rows across its 2 TCs
        ),
    )(kp_slab)
    # TODO(synk): fuse this op into the future PoseNet Pallas kernel (or use plain jnp) when
    # called at tiny batch sizes; as a standalone pallas_call it is launch-overhead bound
    # below a few thousand keypoints.

    return out_slab.reshape(-1)[:total].reshape(B, J, C)


# ---------------------------------------------------------------------------
# MetaPose (JAX) — parameters initialized deterministically; forward mirrors the
# defined portion of the PyTorch module.
# ---------------------------------------------------------------------------
class MetaPoseJAX:
    def __init__(self, key, num_joints: int = 17, text_feat_channel: int = 512,
                 synthetic_vocab: int = 256):
        k_tok, k_prompt = jax.random.split(key)
        # Stand-in for CLIP token_embedding.weight (only its mean/std are used in __init__).
        token_weights = 0.02 * jax.random.normal(
            k_tok, (synthetic_vocab, text_feat_channel), dtype=jnp.float32)
        mean = token_weights.mean()
        std = token_weights.std()
        # nn.Parameter(torch.normal(mean, std, size=(17*10, text_feat_channel)))
        self.learnable_prompts = mean + std * jax.random.normal(
            k_prompt, (num_joints * 10, text_feat_channel), dtype=jnp.float32)
        self.num_joints = num_joints
        # TODO(synk): pose_hrnet image encoder, CLIP text encoder (transformer / ln_final /
        # text_projection) and PoseNet are external modules with no definition in the
        # reference snippet; they are not translated here.

    def __call__(self, images_nhwc, keypoints_2d_cpn, keypoints_2d_cpn_crop,
                 keypoints_3d_gt=None, text_feat=None, action_feat=None, action=None):
        b, l, p = keypoints_2d_cpn.shape  # mirrors `b, l, p = keypoints_2d_cpn.shape`
        del b, l, p

        # (1) keypoint crop normalization — Pallas kernel (the defined hot path).
        kp_crop_norm = normalize_keypoints_2d_crop(keypoints_2d_cpn_crop)

        # (2) The reference does images.permute(0, 3, 1, 2) (NHWC -> NCHW) before HRNet.
        # On TPU the channel/feature axis should stay last (lane axis), so the permute is
        # dropped and the external encoder is expected to consume NHWC directly.
        # TODO(synk): features_list = image_encoder(images_nhwc)            (HRNet undefined)
        # TODO(synk): text_feat = encode_text_all(action_feat, action)      (CLIP undefined)
        # TODO(synk): keypoints_3d = pose_net(keypoints_2d_cpn, kp_crop_norm,
        #                                     features_list, text_feat, keypoints_3d_gt)
        return kp_crop_norm, images_nhwc


if __name__ == "__main__":
    key = jax.random.PRNGKey(0)
    k_img, k_kp, k_crop, k_model = jax.random.split(key, 4)

    B, J, C = 2, 17, 2
    H, W, Cimg = 16, 16, 3

    images = jax.random.normal(k_img, (B, H, W, Cimg), dtype=jnp.float32)          # NHWC
    keypoints_2d_cpn = jax.random.normal(k_kp, (B, J, C), dtype=jnp.float32)
    keypoints_2d_cpn_crop = jax.random.uniform(
        k_crop, (B, J, C), dtype=jnp.float32, minval=0.0, maxval=192.0)

    # Plain-JAX reference (true division, as in the PyTorch /= semantics).
    ref = jnp.stack(
        [keypoints_2d_cpn_crop[..., 0] / (192 // 2) - 1.0,
         keypoints_2d_cpn_crop[..., 1] / (256 // 2) - 1.0],
        axis=-1)

    model = MetaPoseJAX(k_model, num_joints=J, text_feat_channel=512)
    kp_crop_norm, images_out = model(images, keypoints_2d_cpn, keypoints_2d_cpn_crop)
    jax.block_until_ready(kp_crop_norm)
    jax.block_until_ready(images_out)

    assert kp_crop_norm.shape == (B, J, C)
    # Reciprocal-multiply vs. true division differs by <= 1 ulp on channel 0; well within tol.
    assert jnp.allclose(kp_crop_norm, ref, atol=1e-5, rtol=1e-5)
    assert images_out.shape == (B, H, W, Cimg)   # kept NHWC (TPU-friendly layout)

    print("KERNEL_OK")
</pallas_src>

<mosaic_0001>
module attributes {stable_mosaic.version = 11 : i64} {
  func.func @_normalize_crop_kernel(%arg0: i32, %arg1: memref<8x128xf32, #tpu.memory_space<vmem>>, %arg2: memref<8x128xf32, #tpu.memory_space<vmem>>) attributes {dimension_semantics = [#tpu.dimension_semantics<parallel>], iteration_bounds = array<i64: 1>, scalar_prefetch = 0 : i64, scratch_operands = 0 : i64, tpu.core_type = #tpu.core_type<tc>, window_params = [{transform_indices = @transform_0, window_bounds = array<i64: 8, 128>}, {transform_indices = @transform_1, window_bounds = array<i64: 8, 128>}]} {
    %c0 = arith.constant 0 : index
    %c0_0 = arith.constant 0 : index
    %0 = vector.load %arg1[%c0, %c0_0] : memref<8x128xf32, #tpu.memory_space<vmem>>, vector<8x128xf32>
    %1 = tpu.iota {dimensions = array<i32: 1>} : vector<8x128xi32>
    %c1_i32 = arith.constant 1 : i32
    %2 = vector.broadcast %c1_i32 : i32 to vector<8x128xi32>
    %3 = arith.andi %1, %2 : vector<8x128xi32>
    %c0_i32 = arith.constant 0 : i32
    %4 = vector.broadcast %c0_i32 : i32 to vector<8x128xi32>
    %5 = arith.cmpi eq, %3, %4 : vector<8x128xi32>
    %c1_i32_1 = arith.constant 1 : i32
    %6 = vector.broadcast %c1_i32_1 : i32 to vector<8x128xi32>
    %7 = arith.cmpi eq, %3, %6 : vector<8x128xi32>
    %cst = arith.constant 7.812500e-03 : f32
    %cst_2 = arith.constant 1.000000e+00 : f32
    %8 = vector.broadcast %cst : f32 to vector<8x128xf32>
    %9 = vector.broadcast %cst_2 : f32 to vector<8x128xf32>
    %10 = arith.select %7, %8, %9 : vector<8x128xi1>, vector<8x128xf32>
    %cst_3 = arith.constant 0.010416667 : f32
    %11 = vector.broadcast %cst_3 : f32 to vector<8x128xf32>
    %12 = arith.select %5, %11, %10 : vector<8x128xi1>, vector<8x128xf32>
    %c2_i32 = arith.constant 2 : i32
    %13 = vector.broadcast %c2_i32 : i32 to vector<8x128xi32>
    %14 = arith.cmpi slt, %3, %13 : vector<8x128xi32>
    %cst_4 = arith.constant 1.000000e+00 : f32
    %cst_5 = arith.constant 0.000000e+00 : f32
    %15 = vector.broadcast %cst_4 : f32 to vector<8x128xf32>
    %16 = vector.broadcast %cst_5 : f32 to vector<8x128xf32>
    %17 = arith.select %14, %15, %16 : vector<8x128xi1>, vector<8x128xf32>
    %18 = arith.mulf %0, %12 : vector<8x128xf32>
    %19 = arith.subf %18, %17 : vector<8x128xf32>
    %c0_6 = arith.constant 0 : index
    %c0_7 = arith.constant 0 : index
    %20 = vector.load %arg2[%c0_6, %c0_7] : memref<8x128xf32, #tpu.memory_space<vmem>>, vector<8x128xf32>
    tpu.vector_store %arg2[%c0_6, %c0_7], %19 {strides = array<i32>} : memref<8x128xf32, #tpu.memory_space<vmem>>, vector<8x128xf32>,
    return
  }
  func.func @transform_0(%arg0: i32) -> (i32, i32) {
    %c0_i32 = arith.constant 0 : i32
    %c0_i32_0 = arith.constant 0 : i32
    return %arg0, %c0_i32 : i32, i32
  }
  func.func @transform_1(%arg0: i32) -> (i32, i32) {
    %c0_i32 = arith.constant 0 : i32
    %c0_i32_0 = arith.constant 0 : i32
    return %arg0, %c0_i32 : i32, i32
  }
}

</mosaic_0001>

<llo_original>
// kernel: tpu_custom_call.1
$region0: #{tpu_custom_call.1}
  #allocation0 [shape = 'u32[]', space=smem, size = 0x4, offset = 0x4, fixed_abs, tag = 'smem constant byte address 0x4 - core index']
  #allocation1 [shape = 'u32[72,128]{1,0:T(1,128)}', space=vmem, size = 0x9000, scoped, tag = 'internal scratch']
  %s0 = inlined_call_operand.hbm [shape: f32[8,128], index: 0, kind: input, shape index: {}]
  %s1 = inlined_call_operand.hbm [shape: f32[8,128], index: 1, kind: output, shape index: {}]
  %s2 = sld [smem:[#allocation0]]
  $region18: #{tpu_custom_call.1} parent=0
    _
  %s4 = ssub.s32 1, %s2
  %s5 = scalar_select 0, %s4, %s2
  $region1: #{tpu_custom_call.1} parent=0
    #allocation2 [shape = 'u8[4096]{0}', space=vmem, size = 0x1000, scoped, tag = 'input window, operand 0, single buffered']
    #allocation3 [shape = 's32[1]{0}', space=sflag, size = 0x4, scoped, tag = 'scoped memory for tpu_custom_call.1']
    #allocation4 [shape = 's32[1]{0}', space=sflag, size = 0x4, scoped, tag = 'scoped memory for tpu_custom_call.1']
    #allocation5 [shape = 'u8[4096]{0}', space=vmem, size = 0x1000, scoped, tag = 'output window, operand 0, single buffered']
    %6 = vsyncpa [#allocation3], 0
    %7 = vsyncpa [#allocation4], 0
    // Predicated region
    $region2: #{tpu_custom_call.1} parent=1 // pred_check
      _
    $region3: #{tpu_custom_call.1} parent=1 // pred_check_branch
      %9 = sbr.rel (0) target = $region5
    $region4: #{tpu_custom_call.1} parent=1 // pred_region
      %11 = vsyncadd [#allocation3], 0
      %s13 = sshll.u32 %s0, 4
      %s14 = int_to_ptr.hbm [resolvable:$true] %s13
      %s15 = sshll.u32 [#allocation2], 4
      %s16 = int_to_ptr.vmem [resolvable:$true] %s15
      %18 = dma.hbm_to_vmem [thread:$0]  %s14, 128, %s16, [#allocation3]
    $region5: #{tpu_custom_call.1} parent=1 // pred_fallthru
      _
    // Predicated region
    $region6: #{tpu_custom_call.1} parent=1 // pred_check
      _
    $region7: #{tpu_custom_call.1} parent=1 // pred_check_branch
      %20 = sbr.rel (0) target = $region9
    $region8: #{tpu_custom_call.1} parent=1 // pred_region
      %22 = dma.done [#allocation3], 128
    $region9: #{tpu_custom_call.1} parent=1 // pred_fallthru
      _
    %v23 = vld [vmem:[#allocation2] sm:$0xff]
    %v24 = vlaneseq
    %v25 = vand.u32 %v24, 127
    %v26 = vand.u32 %v25, 1
    %vm27 = vcmp.eq.s32.totalorder %v26, 0
    %vm28 = vcmp.eq.s32.totalorder %v26, 1
    %v29 = vsel %vm28, 0.0078125, 1.0
    %v30 = vsel %vm27, 0.010416667, %v29
    %vm31 = vcmp.lt.s32.totalorder %v26, 2
    %v32 = vsel %vm31, 1.0, 0.0
    %v33 = vmul.f32 %v23, %v30
    %v34 = vsub.f32 %v33, %v32
    %35 = vst [vmem:[#allocation5] sm:$0xff] %v34
    // Predicated region
    $region10: #{tpu_custom_call.1} parent=1 // pred_check
      _
    $region11: #{tpu_custom_call.1} parent=1 // pred_check_branch
      %37 = sbr.rel (0) target = $region13
    $region12: #{tpu_custom_call.1} parent=1 // pred_region
      %39 = vsyncadd [#allocation4], 0
      %s41 = sshll.u32 [#allocation5], 4
      %s42 = int_to_ptr.vmem [resolvable:$true] %s41
      %s43 = sshll.u32 %s1, 4
      %s44 = int_to_ptr.hbm [resolvable:$true] %s43
      %46 = dma.vmem_to_hbm [thread:$0]  %s42, 128, %s44, [#allocation4]
    $region13: #{tpu_custom_call.1} parent=1 // pred_fallthru
      _
    // Predicated region
    $region14: #{tpu_custom_call.1} parent=1 // pred_check
      _
    $region15: #{tpu_custom_call.1} parent=1 // pred_check_branch
      %48 = sbr.rel (0) target = $region17
    $region16: #{tpu_custom_call.1} parent=1 // pred_region
      %50 = dma.done [#allocation4], 128
    $region17: #{tpu_custom_call.1} parent=1 // pred_fallthru
      _
    %51 = vsyncpa [#allocation3], 1
    %52 = vsyncpa [#allocation4], 1

</llo_original>
